<compile_context>
chip_gen: v7x
topology: tpu7x:2x2x1
jax: 0.10.0
libtpu: 0.0.40
codegen_flags: <defaults>
</compile_context>

<pallas_src>
import functools

import jax
import jax.numpy as jnp
from jax.experimental import pallas as pl
from jax.experimental.pallas import tpu as pltpu


def ffn_kernel(x_ref, w1_ref, b1_ref, w2_ref, b2_ref, o_ref):
    # x_ref : (tp, pack*F_in)      f32   (cast to bf16 in-kernel, no wrapper cast)
    # w1_ref: (pack*F_in, pack*H)  bf16  block-diagonal, grid-invariant
    # b1_ref: (1, pack*H)          f32   lane-tiled
    # w2_ref: (pack*H, pack*F_out) bf16  block-diagonal, grid-invariant
    # b2_ref: (1, pack*F_out)      f32   lane-tiled
    # o_ref : (tp, pack*F_out)     f32   lane-dense (128-lane unmasked stores)
    xb = x_ref[...].astype(w1_ref.dtype)
    h = jnp.dot(xb, w1_ref[...], preferred_element_type=jnp.float32)
    h = jnp.maximum(h + b1_ref[...], 0.0)                       # bias + ReLU in f32
    out = jnp.dot(h.astype(w2_ref.dtype), w2_ref[...],
                  preferred_element_type=jnp.float32)
    o_ref[...] = (out + b2_ref[...]).astype(o_ref.dtype)


def _block_diag(w, pack):
    """(a, b) -> (pack*a, pack*b) block-diagonal with `pack` copies of w."""
    if pack == 1:
        return w
    a, b = w.shape
    eye = jnp.eye(pack, dtype=w.dtype)
    return (eye[:, None, :, None] * w[None, :, None, :]).reshape(pack * a, pack * b)


def _default_packed_tile(n_p, pack):
    """Largest divisor of n_p that is a multiple of 8, covers <= ~8192 logical rows per
    tile (amortizes ~0.35us/step without blowing VMEM), and leaves >= 2 grid steps when
    the graph is big enough (keeps both v7x TensorCores busy)."""
    cap = max(8, 8192 // pack)              # packed rows per tile
    min_steps = 2 if n_p >= 16 else 1
    best = None
    d = 8
    while d <= n_p:
        if n_p % d == 0 and d <= cap and (n_p // d) >= min_steps:
            best = d
        d += 8
    if best is None:
        best = n_p                          # full-extent block is always legal
    return best


@functools.partial(jax.jit, static_argnames=("tm", "compute_dtype"))
def heter_gcl_forward(x, w1, b1, w2, b2, *, tm=None, compute_dtype=jnp.bfloat16):
    """Fused FFN forward: relu(x @ w1 + b1) @ w2 + b2 (dropout = identity)."""
    n, f_in = x.shape
    hid = w1.shape[1]
    f_out = w2.shape[1]

    # ---- lane-dense row packing: pack logical rows so the output fills 128 lanes ----
    pack = 1
    if 0 < f_out < 128 and 128 % f_out == 0:
        cand = 128 // f_out
        if n % cand == 0:
            pack = cand
    n_p = n // pack
    f_in_p, hid_p, f_out_p = pack * f_in, pack * hid, pack * f_out

    # ---- packed-row tile selection ----
    if tm is None:
        tp = _default_packed_tile(n_p, pack)
    else:
        assert tm % pack == 0, "row tile must be a multiple of the packing factor"
        tp = tm // pack
    assert n_p % tp == 0, "row tile must divide number of (packed) rows (TODO: pad/mask)"
    assert tp % 8 == 0 or tp == n_p, "packed row tile must be a multiple of 8 sublanes"
    grid_steps = n_p // tp

    # ---- operand prep (all O(F*H), grid-invariant; x stays f32 and untouched) ----
    x_packed = x.reshape(n_p, f_in_p)                       # free row-major bitcast view
    w1_blk = _block_diag(w1.astype(compute_dtype), pack)    # (pack*F_in, pack*H)
    w2_blk = _block_diag(w2.astype(compute_dtype), pack)    # (pack*H,  pack*F_out)
    b1_blk = jnp.tile(b1.astype(jnp.float32).reshape(1, hid), (1, pack))
    b2_blk = jnp.tile(b2.astype(jnp.float32).reshape(1, f_out), (1, pack))

    # Grid-invariant operands: single-buffered (no pointless second pipeline buffer).
    const_mode = pl.Buffered(1)
    # Small tiles expose DMA latency behind short compute -> triple-buffer x then.
    if tp * pack <= 1024 and grid_steps >= 3:
        x_spec = pl.BlockSpec((tp, f_in_p), lambda i: (i, 0), pipeline_mode=pl.Buffered(3))
    else:
        x_spec = pl.BlockSpec((tp, f_in_p), lambda i: (i, 0))

    in_specs = [
        x_spec,                                                                       # x row tile (f32)
        pl.BlockSpec((f_in_p, hid_p), lambda i: (0, 0), pipeline_mode=const_mode),    # W1 block-diag
        pl.BlockSpec((1, hid_p), lambda i: (0, 0), pipeline_mode=const_mode),         # b1 lane-tiled
        pl.BlockSpec((hid_p, f_out_p), lambda i: (0, 0), pipeline_mode=const_mode),   # W2 block-diag
        pl.BlockSpec((1, f_out_p), lambda i: (0, 0), pipeline_mode=const_mode),       # b2 lane-tiled
    ]
    out_specs = pl.BlockSpec((tp, f_out_p), lambda i: (i, 0))

    cost = pl.CostEstimate(
        flops=2 * n_p * (f_in_p * hid_p + hid_p * f_out_p),
        transcendentals=0,
        bytes_accessed=(n * f_in * 4                                  # x read (f32)
                        + f_in_p * hid_p * 2 + hid_p * f_out_p * 2    # bf16 block-diag weights
                        + hid_p * 4 + f_out_p * 4                     # f32 biases
                        + n * f_out * 4),                             # f32 output
    )

    packed = pl.pallas_call(
        ffn_kernel,
        out_shape=jax.ShapeDtypeStruct((n_p, f_out_p), jnp.float32),
        grid=(grid_steps,),
        in_specs=in_specs,
        out_specs=out_specs,
        compiler_params=pltpu.CompilerParams(
            dimension_semantics=("parallel",),      # row tiles shard across v7x's 2 TCs
            vmem_limit_bytes=32 * 1024 * 1024,      # explicit; safe on v5e/v6e/v7x
        ),
        cost_estimate=cost,
    )(x_packed, w1_blk, b1_blk, w2_blk, b2_blk)

    # Undo the row packing: free row-major reshape back to (N, F_out).
    return packed.reshape(n, f_out)


if __name__ == "__main__":
    # Small shapes consistent with the module:
    #   N nodes x input_size features -> hidden_size -> output_size
    N = 128
    INPUT_SIZE = 64    # dataset.graph['node_feat'].shape[1]
    HIDDEN_SIZE = 32   # args.hidden_size
    OUTPUT_SIZE = 16   # args.output_size

    key = jax.random.PRNGKey(0)
    kx, kw1, kb1, kw2, kb2 = jax.random.split(key, 5)

    x = jax.random.normal(kx, (N, INPUT_SIZE), dtype=jnp.float32)

    # Deterministic parameter init (mimics nn.Linear uniform(-1/sqrt(fan_in), +)).
    bnd1 = 1.0 / jnp.sqrt(INPUT_SIZE)
    w1 = jax.random.uniform(kw1, (INPUT_SIZE, HIDDEN_SIZE), jnp.float32, -bnd1, bnd1)
    b1 = jax.random.uniform(kb1, (1, HIDDEN_SIZE), jnp.float32, -bnd1, bnd1)
    bnd2 = 1.0 / jnp.sqrt(HIDDEN_SIZE)
    w2 = jax.random.uniform(kw2, (HIDDEN_SIZE, OUTPUT_SIZE), jnp.float32, -bnd2, bnd2)
    b2 = jax.random.uniform(kb2, (1, OUTPUT_SIZE), jnp.float32, -bnd2, bnd2)

    # Plain f32 JAX reference (dropout = identity in eval mode).
    ref = jnp.maximum(x @ w1 + b1, 0.0) @ w2 + b2

    # (a) default tile: 2 parallel row tiles (exercises the pipelined / 2-TC path)
    out_tiled = jax.block_until_ready(heter_gcl_forward(x, w1, b1, w2, b2))
    # (b) tm=N: single full-extent block (exercises the grid=(1,) path)
    out_full = jax.block_until_ready(heter_gcl_forward(x, w1, b1, w2, b2, tm=N))

    assert out_tiled.shape == (N, OUTPUT_SIZE)
    assert out_full.shape == (N, OUTPUT_SIZE)
    # bf16 operands -> loose tolerance vs. the f32 reference.
    assert jnp.allclose(out_tiled, ref, atol=3e-2, rtol=3e-2)
    assert jnp.allclose(out_full, ref, atol=3e-2, rtol=3e-2)
    assert jnp.allclose(out_tiled, out_full, atol=1e-5, rtol=1e-5)

    print("KERNEL_OK")
</pallas_src>

<mosaic_0001>
module attributes {stable_mosaic.version = 11 : i64} {
  func.func @ffn_kernel(%arg0: i32, %arg1: memref<8x512xf32, #tpu.memory_space<vmem>>, %arg2: memref<512x256xbf16, #tpu.memory_space<vmem>>, %arg3: memref<1x256xf32, #tpu.memory_space<vmem>>, %arg4: memref<256x128xbf16, #tpu.memory_space<vmem>>, %arg5: memref<1x128xf32, #tpu.memory_space<vmem>>, %arg6: memref<8x128xf32, #tpu.memory_space<vmem>>) attributes {dimension_semantics = [#tpu.dimension_semantics<parallel>], iteration_bounds = array<i64: 2>, scalar_prefetch = 0 : i64, scratch_operands = 0 : i64, tpu.core_type = #tpu.core_type<tc>, window_params = [{transform_indices = @transform_0, window_bounds = array<i64: 8, 512>}, {pipeline_mode = #tpu.pipeline_mode<synchronous>, transform_indices = @transform_1, window_bounds = array<i64: 512, 256>}, {pipeline_mode = #tpu.pipeline_mode<synchronous>, transform_indices = @transform_2, window_bounds = array<i64: 1, 256>}, {pipeline_mode = #tpu.pipeline_mode<synchronous>, transform_indices = @transform_3, window_bounds = array<i64: 256, 128>}, {pipeline_mode = #tpu.pipeline_mode<synchronous>, transform_indices = @transform_4, window_bounds = array<i64: 1, 128>}, {transform_indices = @transform_5, window_bounds = array<i64: 8, 128>}]} {
    %c0 = arith.constant 0 : index
    %c0_0 = arith.constant 0 : index
    %0 = vector.load %arg1[%c0, %c0_0] : memref<8x512xf32, #tpu.memory_space<vmem>>, vector<8x512xf32>
    %1 = arith.truncf %0 : vector<8x512xf32> to vector<8x512xbf16>
    %c0_1 = arith.constant 0 : index
    %c0_2 = arith.constant 0 : index
    %2 = vector.load %arg2[%c0_1, %c0_2] : memref<512x256xbf16, #tpu.memory_space<vmem>>, vector<512x256xbf16>
    %cst = arith.constant dense<0.000000e+00> : vector<8x256xf32>
    %3 = tpu.matmul %1, %2, %cst {dimension_numbers = #tpu.dot_dimension_numbers<[1], [0], [0], [1], [0, 0, 1, 1], [], []>} : vector<8x512xbf16>, vector<512x256xbf16>, vector<8x256xf32> -> vector<8x256xf32>
    %c0_3 = arith.constant 0 : index
    %c0_4 = arith.constant 0 : index
    %4 = vector.load %arg3[%c0_3, %c0_4] : memref<1x256xf32, #tpu.memory_space<vmem>>, vector<1x256xf32>
    %5 = vector.broadcast %4 : vector<1x256xf32> to vector<8x256xf32>
    %6 = arith.addf %3, %5 : vector<8x256xf32>
    %cst_5 = arith.constant 0.000000e+00 : f32
    %7 = vector.broadcast %cst_5 : f32 to vector<8x256xf32>
    %8 = arith.maximumf %6, %7 : vector<8x256xf32>
    %9 = arith.truncf %8 : vector<8x256xf32> to vector<8x256xbf16>
    %c0_6 = arith.constant 0 : index
    %c0_7 = arith.constant 0 : index
    %10 = vector.load %arg4[%c0_6, %c0_7] : memref<256x128xbf16, #tpu.memory_space<vmem>>, vector<256x128xbf16>
    %cst_8 = arith.constant dense<0.000000e+00> : vector<8x128xf32>
    %11 = tpu.matmul %9, %10, %cst_8 {dimension_numbers = #tpu.dot_dimension_numbers<[1], [0], [0], [1], [0, 0, 1, 1], [], []>} : vector<8x256xbf16>, vector<256x128xbf16>, vector<8x128xf32> -> vector<8x128xf32>
    %c0_9 = arith.constant 0 : index
    %c0_10 = arith.constant 0 : index
    %12 = vector.load %arg5[%c0_9, %c0_10] : memref<1x128xf32, #tpu.memory_space<vmem>>, vector<1x128xf32>
    %13 = vector.broadcast %12 : vector<1x128xf32> to vector<8x128xf32>
    %14 = arith.addf %11, %13 : vector<8x128xf32>
    %c0_11 = arith.constant 0 : index
    %c0_12 = arith.constant 0 : index
    %15 = vector.load %arg6[%c0_11, %c0_12] : memref<8x128xf32, #tpu.memory_space<vmem>>, vector<8x128xf32>
    tpu.vector_store %arg6[%c0_11, %c0_12], %14 {strides = array<i32>} : memref<8x128xf32, #tpu.memory_space<vmem>>, vector<8x128xf32>,
    return
  }
  func.func @transform_0(%arg0: i32) -> (i32, i32) {
    %c0_i32 = arith.constant 0 : i32
    %c0_i32_0 = arith.constant 0 : i32
    return %arg0, %c0_i32 : i32, i32
  }
  func.func @transform_1(%arg0: i32) -> (i32, i32) {
    %c0_i32 = arith.constant 0 : i32
    %c0_i32_0 = arith.constant 0 : i32
    %c0_i32_1 = arith.constant 0 : i32
    return %c0_i32, %c0_i32_0 : i32, i32
  }
  func.func @transform_2(%arg0: i32) -> (i32, i32) {
    %c0_i32 = arith.constant 0 : i32
    %c0_i32_0 = arith.constant 0 : i32
    %c0_i32_1 = arith.constant 0 : i32
    return %c0_i32, %c0_i32_0 : i32, i32
  }
  func.func @transform_3(%arg0: i32) -> (i32, i32) {
    %c0_i32 = arith.constant 0 : i32
    %c0_i32_0 = arith.constant 0 : i32
    %c0_i32_1 = arith.constant 0 : i32
    return %c0_i32, %c0_i32_0 : i32, i32
  }
  func.func @transform_4(%arg0: i32) -> (i32, i32) {
    %c0_i32 = arith.constant 0 : i32
    %c0_i32_0 = arith.constant 0 : i32
    %c0_i32_1 = arith.constant 0 : i32
    return %c0_i32, %c0_i32_0 : i32, i32
  }
  func.func @transform_5(%arg0: i32) -> (i32, i32) {
    %c0_i32 = arith.constant 0 : i32
    %c0_i32_0 = arith.constant 0 : i32
    return %arg0, %c0_i32 : i32, i32
  }
}

</mosaic_0001>

<llo_original>
// kernel: heter_gcl_forward.1
$region0: #{heter_gcl_forward.1}
  #allocation0 [shape = 'u32[]', space=smem, size = 0x4, offset = 0x4, fixed_abs, tag = 'smem constant byte address 0x4 - core index']
  #allocation1 [shape = 'u32[144,128]{1,0:T(1,128)}', space=vmem, size = 0x12000, scoped, tag = 'internal scratch']
  %s0 = inlined_call_operand.vmem [shape: f32[16,512], index: 0, kind: input, shape index: {}]
  %s1 = inlined_call_operand.vmem [shape: bf16[512,256], index: 1, kind: input, shape index: {}]
  %s2 = inlined_call_operand.vmem [shape: f32[1,256], index: 2, kind: input, shape index: {}]
  %s3 = inlined_call_operand.vmem [shape: bf16[256,128], index: 3, kind: input, shape index: {}]
  %s4 = inlined_call_operand.vmem [shape: f32[1,128], index: 4, kind: input, shape index: {}]
  %s5 = inlined_call_operand.vmem [shape: f32[16,128], index: 5, kind: output, shape index: {}]
  %s6 = sld [smem:[#allocation0]]
  $region53: #{heter_gcl_forward.1} parent=0
    _
  %s8 = ssub.s32 1, %s6
  %s9 = scalar_select 0, %s8, %s6
  loop: start=0, step=1, limit=4
  $region2: #{heter_gcl_forward.1} parent=0 // loop_pre_header
    _
  $region3: #{heter_gcl_forward.1} parent=0 // loop_header
    %s11 = sphi 0, %s15
    %p12 = scmp.ge.s32.totalorder %s11, 4
    %s21 = sphi 0, %s23
    %s24 = sphi 0, %s21
    %s25 = sphi 0, %s24
    %s41 = sphi 0, %s25
    %s45 = sphi 0, %s45
    %s47 = sphi 0, %s45
    %s48 = sphi 0, %s47
    %s62 = sphi 0, %s48
    %s66 = sphi 0, %s66
    %s68 = sphi 0, %s66
    %s69 = sphi 0, %s68
    %s83 = sphi 0, %s69
    %s87 = sphi 0, %s87
    %s89 = sphi 0, %s87
    %s90 = sphi 0, %s89
    %s104 = sphi 0, %s90
    %s108 = sphi 0, %s108
    %s110 = sphi 0, %s108
    %s111 = sphi 0, %s110
    %s125 = sphi 0, %s111
    %s131 = sphi 0, %s133
    %s134 = sphi 0, %s131
    %s135 = sphi 0, %s134
    %s151 = sphi 0, %s135
  $region4: #{heter_gcl_forward.1} parent=0 // loop_header_branch
    %14 = sbr.rel (%p12) target = $region8
  $region5: #{heter_gcl_forward.1} parent=0 // loop_body
    %s16 = ssub.s32 %s11, 1
    %s17 = ssub.s32 %s11, 2
    %s18 = sadd.s32 %s11, 1
    %s19 = ssub.s32 %s11, %s18
    %p20 = scmp.eq.s32.totalorder %s19, 0
    %s22 = sadd.s32 %s21, 1
    %s23 = scalar_select %p20, %s21, %s22
    %p26 = pneg %p20
    %p27 = scmp.eq.s32.totalorder %s11, 1
    %p28 = por %p26, %p27
    %p29 = scmp.ne.s32.totalorder %s21, %s24
    %p30 = scmp.eq.s32.totalorder %s11, 0
    %p31 = por %p29, %p30
    %p32 = scmp.ne.s32.totalorder %s21, %s24
    %p33 = scmp.eq.s32.totalorder %s16, 1
    %p34 = por %p32, %p33
    %p35 = scmp.ne.s32.totalorder %s24, %s25
    %p36 = scmp.eq.s32.totalorder %s16, 0
    %p37 = por %p35, %p36
    %p38 = scmp.ne.s32.totalorder %s24, %s25
    %p39 = scmp.eq.s32.totalorder %s17, 1
    %p40 = por %p38, %p39
    %p42 = scmp.ne.s32.totalorder %s25, %s41
    %p43 = scmp.eq.s32.totalorder %s17, 0
    %p44 = por %p42, %p43
    %s46 = sadd.s32 %s45, 1
    %p49 = scmp.eq.s32.totalorder %s11, 1
    %p50 = scmp.ne.s32.totalorder %s45, %s47
    %p51 = scmp.eq.s32.totalorder %s11, 0
    %p52 = por %p50, %p51
    %p53 = scmp.ne.s32.totalorder %s45, %s47
    %p54 = scmp.eq.s32.totalorder %s16, 1
    %p55 = por %p53, %p54
    %p56 = scmp.ne.s32.totalorder %s47, %s48
    %p57 = scmp.eq.s32.totalorder %s16, 0
    %p58 = por %p56, %p57
    %p59 = scmp.ne.s32.totalorder %s47, %s48
    %p60 = scmp.eq.s32.totalorder %s17, 1
    %p61 = por %p59, %p60
    %p63 = scmp.ne.s32.totalorder %s48, %s62
    %p64 = scmp.eq.s32.totalorder %s17, 0
    %p65 = por %p63, %p64
    %s67 = sadd.s32 %s66, 1
    %p70 = scmp.eq.s32.totalorder %s11, 1
    %p71 = scmp.ne.s32.totalorder %s66, %s68
    %p72 = scmp.eq.s32.totalorder %s11, 0
    %p73 = por %p71, %p72
    %p74 = scmp.ne.s32.totalorder %s66, %s68
    %p75 = scmp.eq.s32.totalorder %s16, 1
    %p76 = por %p74, %p75
    %p77 = scmp.ne.s32.totalorder %s68, %s69
    %p78 = scmp.eq.s32.totalorder %s16, 0
    %p79 = por %p77, %p78
    %p80 = scmp.ne.s32.totalorder %s68, %s69
    %p81 = scmp.eq.s32.totalorder %s17, 1
    %p82 = por %p80, %p81
    %p84 = scmp.ne.s32.totalorder %s69, %s83
    %p85 = scmp.eq.s32.totalorder %s17, 0
    %p86 = por %p84, %p85
    %s88 = sadd.s32 %s87, 1
    %p91 = scmp.eq.s32.totalorder %s11, 1
    %p92 = scmp.ne.s32.totalorder %s87, %s89
    %p93 = scmp.eq.s32.totalorder %s11, 0
    %p94 = por %p92, %p93
    %p95 = scmp.ne.s32.totalorder %s87, %s89
    %p96 = scmp.eq.s32.totalorder %s16, 1
    %p97 = por %p95, %p96
    %p98 = scmp.ne.s32.totalorder %s89, %s90
    %p99 = scmp.eq.s32.totalorder %s16, 0
    %p100 = por %p98, %p99
    %p101 = scmp.ne.s32.totalorder %s89, %s90
    %p102 = scmp.eq.s32.totalorder %s17, 1
    %p103 = por %p101, %p102
    %p105 = scmp.ne.s32.totalorder %s90, %s104
    %p106 = scmp.eq.s32.totalorder %s17, 0
    %p107 = por %p105, %p106
    %s109 = sadd.s32 %s108, 1
    %p112 = scmp.eq.s32.totalorder %s11, 1
    %p113 = scmp.ne.s32.totalorder %s108, %s110
    %p114 = scmp.eq.s32.totalorder %s11, 0
    %p115 = por %p113, %p114
    %p116 = scmp.ne.s32.totalorder %s108, %s110
    %p117 = scmp.eq.s32.totalorder %s16, 1
    %p118 = por %p116, %p117
    %p119 = scmp.ne.s32.totalorder %s110, %s111
    %p120 = scmp.eq.s32.totalorder %s16, 0
    %p121 = por %p119, %p120
    %p122 = scmp.ne.s32.totalorder %s110, %s111
    %p123 = scmp.eq.s32.totalorder %s17, 1
    %p124 = por %p122, %p123
    %p126 = scmp.ne.s32.totalorder %s111, %s125
    %p127 = scmp.eq.s32.totalorder %s17, 0
    %p128 = por %p126, %p127
    %s129 = ssub.s32 %s11, %s18
    %p130 = scmp.eq.s32.totalorder %s129, 0
    %s132 = sadd.s32 %s131, 1
    %s133 = scalar_select %p130, %s131, %s132
    %p136 = pneg %p130
    %p137 = scmp.eq.s32.totalorder %s11, 1
    %p138 = por %p136, %p137
    %p139 = scmp.ne.s32.totalorder %s131, %s134
    %p140 = scmp.eq.s32.totalorder %s11, 0
    %p141 = por %p139, %p140
    %p142 = scmp.ne.s32.totalorder %s131, %s134
    %p143 = scmp.eq.s32.totalorder %s16, 1
    %p144 = por %p142, %p143
    %p145 = scmp.ne.s32.totalorder %s134, %s135
    %p146 = scmp.eq.s32.totalorder %s16, 0
    %p147 = por %p145, %p146
    %p148 = scmp.ne.s32.totalorder %s134, %s135
    %p149 = scmp.eq.s32.totalorder %s17, 1
    %p150 = por %p148, %p149
    %p152 = scmp.ne.s32.totalorder %s135, %s151
    %p153 = scmp.eq.s32.totalorder %s17, 0
    %p154 = por %p152, %p153
    %p155 = scmp.le.s32.totalorder 1, %s11
    %p156 = scmp.lt.s32.totalorder %s11, 3
    %p157 = pnand %p155, %p156
    %p158 = pneg %p157
    // Predicated region
    $region9: #{heter_gcl_forward.1} parent=5 // pred_check
      _
    $region10: #{heter_gcl_forward.1} parent=5 // pred_check_branch
      %160 = sbr.rel (%p157) target = $region12
    $region11: #{heter_gcl_forward.1} parent=5 // pred_region
      %s161 = ssub.s32 %s11, 1
      // Predicated region
      $region13: #{heter_gcl_forward.1} parent=11 // pred_check
        %p162 = pneg %p58
      $region14: #{heter_gcl_forward.1} parent=11 // pred_check_branch
        %164 = sbr.rel (%p162) target = $region16
      $region15: #{heter_gcl_forward.1} parent=11 // pred_region
        _
      $region16: #{heter_gcl_forward.1} parent=11 // pred_fallthru
        _
      // Predicated region
      $region17: #{heter_gcl_forward.1} parent=11 // pred_check
        %p165 = pneg %p79
      $region18: #{heter_gcl_forward.1} parent=11 // pred_check_branch
        %167 = sbr.rel (%p165) target = $region20
      $region19: #{heter_gcl_forward.1} parent=11 // pred_region
        _
      $region20: #{heter_gcl_forward.1} parent=11 // pred_fallthru
        _
      // Predicated region
      $region21: #{heter_gcl_forward.1} parent=11 // pred_check
        %p168 = pneg %p100
      $region22: #{heter_gcl_forward.1} parent=11 // pred_check_branch
        %170 = sbr.rel (%p168) target = $region24
      $region23: #{heter_gcl_forward.1} parent=11 // pred_region
        _
      $region24: #{heter_gcl_forward.1} parent=11 // pred_fallthru
        _
      // Predicated region
      $region25: #{heter_gcl_forward.1} parent=11 // pred_check
        %p171 = pneg %p121
      $region26: #{heter_gcl_forward.1} parent=11 // pred_check_branch
        %173 = sbr.rel (%p171) target = $region28
      $region27: #{heter_gcl_forward.1} parent=11 // pred_region
        _
      $region28: #{heter_gcl_forward.1} parent=11 // pred_fallthru
        _
    $region12: #{heter_gcl_forward.1} parent=5 // pred_fallthru
      _
    %p174 = scmp.lt.s32.totalorder %s11, 2
    // Predicated region
    $region29: #{heter_gcl_forward.1} parent=5 // pred_check
      %p175 = pneg %p174
    $region30: #{heter_gcl_forward.1} parent=5 // pred_check_branch
      %177 = sbr.rel (%p175) target = $region32
    $region31: #{heter_gcl_forward.1} parent=5 // pred_region
      // Predicated region
      $region33: #{heter_gcl_forward.1} parent=31 // pred_check
        %p178 = pneg %p31
      $region34: #{heter_gcl_forward.1} parent=31 // pred_check_branch
        %180 = sbr.rel (%p178) target = $region36
      $region35: #{heter_gcl_forward.1} parent=31 // pred_region
        %p181 = scmp.lt.s32.totalorder %s11, 1
        %s182 = scalar_select %p181, %s11, 1
        %s183 = smul.addr %s182, 4
        %s184 = smul.addr %s183, 8
        %s185 = scalar_lea.vmem %s0, %s184
      $region36: #{heter_gcl_forward.1} parent=31 // pred_fallthru
        _
    $region32: #{heter_gcl_forward.1} parent=5 // pred_fallthru
      _
    %p186 = scmp.le.s32.totalorder 1, %s11
    %p187 = scmp.lt.s32.totalorder %s11, 3
    %p188 = pnand %p186, %p187
    %p189 = pneg %p188
    // Predicated region
    $region37: #{heter_gcl_forward.1} parent=5 // pred_check
      _
    $region38: #{heter_gcl_forward.1} parent=5 // pred_check_branch
      %191 = sbr.rel (%p188) target = $region40
    $region39: #{heter_gcl_forward.1} parent=5 // pred_region
      %s192 = ssub.s32 %s11, 1
      %p193 = scmp.lt.s32.totalorder %s16, 1
      %s194 = scalar_select %p193, %s16, 1
      %s195 = smul.addr %s194, 4
      %s196 = smul.addr %s195, 8
      %s197 = scalar_lea.vmem %s0, %s196
      %p198 = pneg %p37
      %p199 = pneg %p34
      %p200 = pneg %p58
      %p201 = pneg %p55
      %p202 = pneg %p79
      %p203 = pneg %p76
      %p204 = pneg %p100
      %p205 = pneg %p97
      %p206 = pneg %p121
      %p207 = pneg %p118
      %p208 = pneg %p147
      %p209 = pneg %p144
      %p210 = scmp.lt.s32.totalorder %s16, 1
      %s211 = scalar_select %p210, %s16, 1
      %s212 = smul.addr %s211, 8
      %s213 = scalar_lea.vmem %s5, %s212
      %p214 = scmp.lt.s32.totalorder %s16, 1
      %s215 = scalar_select %p214, %s16, 1
      %s216 = smul.addr %s215, 4
      %s217 = smul.addr %s216, 8
      %s218 = scalar_lea.vmem %s0, %s217
      %p219 = scmp.lt.s32.totalorder %s16, 1
      %s220 = scalar_select %p219, %s16, 1
      %s221 = smul.addr %s220, 8
      %s222 = scalar_lea.vmem %s5, %s221
      %v224 = vld [vmem:[%s218] sm:$0xff]
      %v225 = vld [vmem:[%s218 + $0x8] sm:$0xff]
      %v226 = vld [vmem:[%s218 + $0x10] sm:$0xff]
      %v227 = vld [vmem:[%s218 + $0x18] sm:$0xff]
      %v228 = vpack.c.bf16 %v224, %v224
      %v229 = vpack.c.bf16 %v225, %v225
      %v230 = vpack.c.bf16 %v226, %v226
      %v231 = vpack.c.bf16 %v227, %v227
      %v232 = vld [vmem:[%s1] sm:$0xff]
      %v233 = vld [vmem:[%s1 + $0x8] sm:$0xff]
      %v234 = vld [vmem:[%s1 + $0x10] sm:$0xff]
      %v235 = vld [vmem:[%s1 + $0x18] sm:$0xff]
      %v236 = vld [vmem:[%s1 + $0x20] sm:$0xff]
      %v237 = vld [vmem:[%s1 + $0x28] sm:$0xff]
      %v238 = vld [vmem:[%s1 + $0x30] sm:$0xff]
      %v239 = vld [vmem:[%s1 + $0x38] sm:$0xff]
      %v240 = vld [vmem:[%s1 + $0x40] sm:$0xff]
      %v241 = vld [vmem:[%s1 + $0x48] sm:$0xff]
      %v242 = vld [vmem:[%s1 + $0x50] sm:$0xff]
      %v243 = vld [vmem:[%s1 + $0x58] sm:$0xff]
      %v244 = vld [vmem:[%s1 + $0x60] sm:$0xff]
      %v245 = vld [vmem:[%s1 + $0x68] sm:$0xff]
      %v246 = vld [vmem:[%s1 + $0x70] sm:$0xff]
      %v247 = vld [vmem:[%s1 + $0x78] sm:$0xff]
      %v248 = vld [vmem:[%s1 + $0x80] sm:$0xff]
      %v249 = vld [vmem:[%s1 + $0x88] sm:$0xff]
      %v250 = vld [vmem:[%s1 + $0x90] sm:$0xff]
      %v251 = vld [vmem:[%s1 + $0x98] sm:$0xff]
      %v252 = vld [vmem:[%s1 + $0xa0] sm:$0xff]
      %v253 = vld [vmem:[%s1 + $0xa8] sm:$0xff]
      %v254 = vld [vmem:[%s1 + $0xb0] sm:$0xff]
      %v255 = vld [vmem:[%s1 + $0xb8] sm:$0xff]
      %v256 = vld [vmem:[%s1 + $0xc0] sm:$0xff]
      %v257 = vld [vmem:[%s1 + $0xc8] sm:$0xff]
      %v258 = vld [vmem:[%s1 + $0xd0] sm:$0xff]
      %v259 = vld [vmem:[%s1 + $0xd8] sm:$0xff]
      %v260 = vld [vmem:[%s1 + $0xe0] sm:$0xff]
      %v261 = vld [vmem:[%s1 + $0xe8] sm:$0xff]
      %v262 = vld [vmem:[%s1 + $0xf0] sm:$0xff]
      %v263 = vld [vmem:[%s1 + $0xf8] sm:$0xff]
      %v264 = vld [vmem:[%s1 + $0x100] sm:$0xff]
      %v265 = vld [vmem:[%s1 + $0x108] sm:$0xff]
      %v266 = vld [vmem:[%s1 + $0x110] sm:$0xff]
      %v267 = vld [vmem:[%s1 + $0x118] sm:$0xff]
      %v268 = vld [vmem:[%s1 + $0x120] sm:$0xff]
      %v269 = vld [vmem:[%s1 + $0x128] sm:$0xff]
      %v270 = vld [vmem:[%s1 + $0x130] sm:$0xff]
      %v271 = vld [vmem:[%s1 + $0x138] sm:$0xff]
      %v272 = vld [vmem:[%s1 + $0x140] sm:$0xff]
      %v273 = vld [vmem:[%s1 + $0x148] sm:$0xff]
      %v274 = vld [vmem:[%s1 + $0x150] sm:$0xff]
      %v275 = vld [vmem:[%s1 + $0x158] sm:$0xff]
      %v276 = vld [vmem:[%s1 + $0x160] sm:$0xff]
      %v277 = vld [vmem:[%s1 + $0x168] sm:$0xff]
      %v278 = vld [vmem:[%s1 + $0x170] sm:$0xff]
      %v279 = vld [vmem:[%s1 + $0x178] sm:$0xff]
      %v280 = vld [vmem:[%s1 + $0x180] sm:$0xff]
      %v281 = vld [vmem:[%s1 + $0x188] sm:$0xff]
      %v282 = vld [vmem:[%s1 + $0x190] sm:$0xff]
      %v283 = vld [vmem:[%s1 + $0x198] sm:$0xff]
      %v284 = vld [vmem:[%s1 + $0x1a0] sm:$0xff]
      %v285 = vld [vmem:[%s1 + $0x1a8] sm:$0xff]
      %v286 = vld [vmem:[%s1 + $0x1b0] sm:$0xff]
      %v287 = vld [vmem:[%s1 + $0x1b8] sm:$0xff]
      %v288 = vld [vmem:[%s1 + $0x1c0] sm:$0xff]
      %v289 = vld [vmem:[%s1 + $0x1c8] sm:$0xff]
      %v290 = vld [vmem:[%s1 + $0x1d0] sm:$0xff]
      %v291 = vld [vmem:[%s1 + $0x1d8] sm:$0xff]
      %v292 = vld [vmem:[%s1 + $0x1e0] sm:$0xff]
      %v293 = vld [vmem:[%s1 + $0x1e8] sm:$0xff]
      %v294 = vld [vmem:[%s1 + $0x1f0] sm:$0xff]
      %v295 = vld [vmem:[%s1 + $0x1f8] sm:$0xff]
      %v296 = vld [vmem:[%s2] sm:$0x3]
      %v298 = vlaneseq
      %v299 = vshrl.u32 %v298, 7
      %v300 = vsub.s32 0, %v299
      %v301 = vrot.slane %v296, %v300
      %v302 = vlaneseq
      %v303 = vshrl.u32 %v302, 7
      %v304 = vsub.s32 1, %v303
      %v305 = vrot.slane %v296, %v304
      %v372 = vunpack.c.l.b16 %v232
      %v373 = vunpack.c.h.b16 %v232
      %v374 = vunpack.c.l.b16 %v233
      %v375 = vunpack.c.h.b16 %v233
      %v376 = vunpack.c.l.b16 %v234
      %v377 = vunpack.c.h.b16 %v234
      %v378 = vunpack.c.l.b16 %v235
      %v379 = vunpack.c.h.b16 %v235
      %v380 = vunpack.c.l.b16 %v236
      %v381 = vunpack.c.h.b16 %v236
      %v382 = vunpack.c.l.b16 %v237
      %v383 = vunpack.c.h.b16 %v237
      %v384 = vunpack.c.l.b16 %v238
      %v385 = vunpack.c.h.b16 %v238
      %v386 = vunpack.c.l.b16 %v239
      %v387 = vunpack.c.h.b16 %v239
      %v388 = vunpack.c.l.b16 %v240
      %v389 = vunpack.c.h.b16 %v240
      %v390 = vunpack.c.l.b16 %v241
      %v391 = vunpack.c.h.b16 %v241
      %v392 = vunpack.c.l.b16 %v242
      %v393 = vunpack.c.h.b16 %v242
      %v394 = vunpack.c.l.b16 %v243
      %v395 = vunpack.c.h.b16 %v243
      %v396 = vunpack.c.l.b16 %v244
      %v397 = vunpack.c.h.b16 %v244
      %v398 = vunpack.c.l.b16 %v245
      %v399 = vunpack.c.h.b16 %v245
      %v400 = vunpack.c.l.b16 %v246
      %v401 = vunpack.c.h.b16 %v246
      %v402 = vunpack.c.l.b16 %v247
      %v403 = vunpack.c.h.b16 %v247
      %v404 = vunpack.c.l.b16 %v248
      %v405 = vunpack.c.h.b16 %v248
      %v406 = vunpack.c.l.b16 %v249
      %v407 = vunpack.c.h.b16 %v249
      %v408 = vunpack.c.l.b16 %v250
      %v409 = vunpack.c.h.b16 %v250
      %v410 = vunpack.c.l.b16 %v251
      %v411 = vunpack.c.h.b16 %v251
      %v412 = vunpack.c.l.b16 %v252
      %v413 = vunpack.c.h.b16 %v252
      %v414 = vunpack.c.l.b16 %v253
      %v415 = vunpack.c.h.b16 %v253
      %v416 = vunpack.c.l.b16 %v254
      %v417 = vunpack.c.h.b16 %v254
      %v418 = vunpack.c.l.b16 %v255
      %v419 = vunpack.c.h.b16 %v255
      %v420 = vunpack.c.l.b16 %v256
      %v421 = vunpack.c.h.b16 %v256
      %v422 = vunpack.c.l.b16 %v257
      %v423 = vunpack.c.h.b16 %v257
      %v424 = vunpack.c.l.b16 %v258
      %v425 = vunpack.c.h.b16 %v258
      %v426 = vunpack.c.l.b16 %v259
      %v427 = vunpack.c.h.b16 %v259
      %v428 = vunpack.c.l.b16 %v260
      %v429 = vunpack.c.h.b16 %v260
      %v430 = vunpack.c.l.b16 %v261
      %v431 = vunpack.c.h.b16 %v261
      %v432 = vunpack.c.l.b16 %v262
      %v433 = vunpack.c.h.b16 %v262
      %v434 = vunpack.c.l.b16 %v263
      %v435 = vunpack.c.h.b16 %v263
      %v436 = vunpack.c.l.b16 %v264
      %v437 = vunpack.c.h.b16 %v264
      %v438 = vunpack.c.l.b16 %v265
      %v439 = vunpack.c.h.b16 %v265
      %v440 = vunpack.c.l.b16 %v266
      %v441 = vunpack.c.h.b16 %v266
      %v442 = vunpack.c.l.b16 %v267
      %v443 = vunpack.c.h.b16 %v267
      %v444 = vunpack.c.l.b16 %v268
      %v445 = vunpack.c.h.b16 %v268
      %v446 = vunpack.c.l.b16 %v269
      %v447 = vunpack.c.h.b16 %v269
      %v448 = vunpack.c.l.b16 %v270
      %v449 = vunpack.c.h.b16 %v270
      %v450 = vunpack.c.l.b16 %v271
      %v451 = vunpack.c.h.b16 %v271
      %v452 = vunpack.c.l.b16 %v272
      %v453 = vunpack.c.h.b16 %v272
      %v454 = vunpack.c.l.b16 %v273
      %v455 = vunpack.c.h.b16 %v273
      %v456 = vunpack.c.l.b16 %v274
      %v457 = vunpack.c.h.b16 %v274
      %v458 = vunpack.c.l.b16 %v275
      %v459 = vunpack.c.h.b16 %v275
      %v460 = vunpack.c.l.b16 %v276
      %v461 = vunpack.c.h.b16 %v276
      %v462 = vunpack.c.l.b16 %v277
      %v463 = vunpack.c.h.b16 %v277
      %v464 = vunpack.c.l.b16 %v278
      %v465 = vunpack.c.h.b16 %v278
      %v466 = vunpack.c.l.b16 %v279
      %v467 = vunpack.c.h.b16 %v279
      %v468 = vunpack.c.l.b16 %v280
      %v469 = vunpack.c.h.b16 %v280
      %v470 = vunpack.c.l.b16 %v281
      %v471 = vunpack.c.h.b16 %v281
      %v472 = vunpack.c.l.b16 %v282
      %v473 = vunpack.c.h.b16 %v282
      %v474 = vunpack.c.l.b16 %v283
      %v475 = vunpack.c.h.b16 %v283
      %v476 = vunpack.c.l.b16 %v284
      %v477 = vunpack.c.h.b16 %v284
      %v478 = vunpack.c.l.b16 %v285
      %v479 = vunpack.c.h.b16 %v285
      %v480 = vunpack.c.l.b16 %v286
      %v481 = vunpack.c.h.b16 %v286
      %v482 = vunpack.c.l.b16 %v287
      %v483 = vunpack.c.h.b16 %v287
      %v484 = vunpack.c.l.b16 %v288
      %v485 = vunpack.c.h.b16 %v288
      %v486 = vunpack.c.l.b16 %v289
      %v487 = vunpack.c.h.b16 %v289
      %v488 = vunpack.c.l.b16 %v290
      %v489 = vunpack.c.h.b16 %v290
      %v490 = vunpack.c.l.b16 %v291
      %v491 = vunpack.c.h.b16 %v291
      %v492 = vunpack.c.l.b16 %v292
      %v493 = vunpack.c.h.b16 %v292
      %v494 = vunpack.c.l.b16 %v293
      %v495 = vunpack.c.h.b16 %v293
      %v496 = vunpack.c.l.b16 %v294
      %v497 = vunpack.c.h.b16 %v294
      %v498 = vunpack.c.l.b16 %v295
      %v499 = vunpack.c.h.b16 %v295
      %v500 = vpack.c.b16 %v374, %v372
      %v501 = vpack.c.b16 %v375, %v373
      %v502 = vpack.c.b16 %v378, %v376
      %v503 = vpack.c.b16 %v379, %v377
      %v504 = vpack.c.b16 %v382, %v380
      %v505 = vpack.c.b16 %v383, %v381
      %v506 = vpack.c.b16 %v386, %v384
      %v507 = vpack.c.b16 %v387, %v385
      %v508 = vpack.c.b16 %v390, %v388
      %v509 = vpack.c.b16 %v391, %v389
      %v510 = vpack.c.b16 %v394, %v392
      %v511 = vpack.c.b16 %v395, %v393
      %v512 = vpack.c.b16 %v398, %v396
      %v513 = vpack.c.b16 %v399, %v397
      %v514 = vpack.c.b16 %v402, %v400
      %v515 = vpack.c.b16 %v403, %v401
      %v516 = vpack.c.b16 %v406, %v404
      %v517 = vpack.c.b16 %v407, %v405
      %v518 = vpack.c.b16 %v410, %v408
      %v519 = vpack.c.b16 %v411, %v409
      %v520 = vpack.c.b16 %v414, %v412
      %v521 = vpack.c.b16 %v415, %v413
      %v522 = vpack.c.b16 %v418, %v416
      %v523 = vpack.c.b16 %v419, %v417
      %v524 = vpack.c.b16 %v422, %v420
      %v525 = vpack.c.b16 %v423, %v421
      %v526 = vpack.c.b16 %v426, %v424
      %v527 = vpack.c.b16 %v427, %v425
      %v528 = vpack.c.b16 %v430, %v428
      %v529 = vpack.c.b16 %v431, %v429
      %v530 = vpack.c.b16 %v434, %v432
      %v531 = vpack.c.b16 %v435, %v433
      %v532 = vpack.c.b16 %v438, %v436
      %v533 = vpack.c.b16 %v439, %v437
      %v534 = vpack.c.b16 %v442, %v440
      %v535 = vpack.c.b16 %v443, %v441
      %v536 = vpack.c.b16 %v446, %v444
      %v537 = vpack.c.b16 %v447, %v445
      %v538 = vpack.c.b16 %v450, %v448
      %v539 = vpack.c.b16 %v451, %v449
      %v540 = vpack.c.b16 %v454, %v452
      %v541 = vpack.c.b16 %v455, %v453
      %v542 = vpack.c.b16 %v458, %v456
      %v543 = vpack.c.b16 %v459, %v457
      %v544 = vpack.c.b16 %v462, %v460
      %v545 = vpack.c.b16 %v463, %v461
      %v546 = vpack.c.b16 %v466, %v464
      %v547 = vpack.c.b16 %v467, %v465
      %v548 = vpack.c.b16 %v470, %v468
      %v549 = vpack.c.b16 %v471, %v469
      %v550 = vpack.c.b16 %v474, %v472
      %v551 = vpack.c.b16 %v475, %v473
      %v552 = vpack.c.b16 %v478, %v476
      %v553 = vpack.c.b16 %v479, %v477
      %v554 = vpack.c.b16 %v482, %v480
      %v555 = vpack.c.b16 %v483, %v481
      %v556 = vpack.c.b16 %v486, %v484
      %v557 = vpack.c.b16 %v487, %v485
      %v558 = vpack.c.b16 %v490, %v488
      %v559 = vpack.c.b16 %v491, %v489
      %v560 = vpack.c.b16 %v494, %v492
      %v561 = vpack.c.b16 %v495, %v493
      %v562 = vpack.c.b16 %v498, %v496
      %v563 = vpack.c.b16 %v499, %v497
      %628 = vmatprep.subr.bf16.mxu0 %v501
      %629 = vmatpush1.bf16.msra.mxu0 %v500
      %630 = vmatprep.subr.bf16.mxu0 %v503
      %631 = vmatpush1.bf16.msra.mxu0 %v502
      %632 = vmatprep.subr.bf16.mxu0 %v505
      %633 = vmatpush1.bf16.msra.mxu0 %v504
      %634 = vmatprep.subr.bf16.mxu0 %v507
      %635 = vmatpush1.bf16.msra.mxu0 %v506
      %636 = vmatprep.subr.bf16.mxu0 %v509
      %637 = vmatpush1.bf16.msra.mxu0 %v508
      %638 = vmatprep.subr.bf16.mxu0 %v511
      %639 = vmatpush1.bf16.msra.mxu0 %v510
      %640 = vmatprep.subr.bf16.mxu0 %v513
      %641 = vmatpush1.bf16.msra.mxu0 %v512
      %642 = vmatprep.subr.bf16.mxu0 %v515
      %643 = vmatpush1.bf16.msra.mxu0 %v514
      %644 = vmatprep.subr.bf16.mxu0 %v517
      %645 = vmatpush1.bf16.msra.mxu0 %v516
      %646 = vmatprep.subr.bf16.mxu0 %v519
      %647 = vmatpush1.bf16.msra.mxu0 %v518
      %648 = vmatprep.subr.bf16.mxu0 %v521
      %649 = vmatpush1.bf16.msra.mxu0 %v520
      %650 = vmatprep.subr.bf16.mxu0 %v523
      %651 = vmatpush1.bf16.msra.mxu0 %v522
      %652 = vmatprep.subr.bf16.mxu0 %v525
      %653 = vmatpush1.bf16.msra.mxu0 %v524
      %654 = vmatprep.subr.bf16.mxu0 %v527
      %655 = vmatpush1.bf16.msra.mxu0 %v526
      %656 = vmatprep.subr.bf16.mxu0 %v529
      %657 = vmatpush1.bf16.msra.mxu0 %v528
      %658 = vmatprep.subr.bf16.mxu0 %v531
      %659 = vmatpush1.bf16.msra.mxu0 %v530
      %660 = vmatprep.mubr.bf16.mxu0 %v229
      %661 = vmatmul.mubr.bf16.gmra.mrb[0].mxu0 %v228
      %v662 = vpop.f32.mrb[0].mxu0
      %v663 = vadd.f32 %v301, %v662
      %v664 = vpop.f32.mrb[0].mxu0
      %v665 = vadd.f32 %v305, %v664
      %v666 = vpop.f32.mrb[0].mxu0
      %v667 = vpop.f32.mrb[0].mxu0
      %668 = vdwg.mxu0
      %669 = vmatprep.subr.bf16.mxu0 %v533
      %670 = vmatpush1.bf16.msra.mxu0 %v532
      %671 = vmatprep.subr.bf16.mxu0 %v535
      %672 = vmatpush1.bf16.msra.mxu0 %v534
      %673 = vmatprep.subr.bf16.mxu0 %v537
      %674 = vmatpush1.bf16.msra.mxu0 %v536
      %675 = vmatprep.subr.bf16.mxu0 %v539
      %676 = vmatpush1.bf16.msra.mxu0 %v538
      %677 = vmatprep.subr.bf16.mxu0 %v541
      %678 = vmatpush1.bf16.msra.mxu0 %v540
      %679 = vmatprep.subr.bf16.mxu0 %v543
      %680 = vmatpush1.bf16.msra.mxu0 %v542
      %681 = vmatprep.subr.bf16.mxu0 %v545
      %682 = vmatpush1.bf16.msra.mxu0 %v544
      %683 = vmatprep.subr.bf16.mxu0 %v547
      %684 = vmatpush1.bf16.msra.mxu0 %v546
      %685 = vmatprep.subr.bf16.mxu0 %v549
      %686 = vmatpush1.bf16.msra.mxu0 %v548
      %687 = vmatprep.subr.bf16.mxu0 %v551
      %688 = vmatpush1.bf16.msra.mxu0 %v550
      %689 = vmatprep.subr.bf16.mxu0 %v553
      %690 = vmatpush1.bf16.msra.mxu0 %v552
      %691 = vmatprep.subr.bf16.mxu0 %v555
      %692 = vmatpush1.bf16.msra.mxu0 %v554
      %693 = vmatprep.subr.bf16.mxu0 %v557
      %694 = vmatpush1.bf16.msra.mxu0 %v556
      %695 = vmatprep.subr.bf16.mxu0 %v559
      %696 = vmatpush1.bf16.msra.mxu0 %v558
      %697 = vmatprep.subr.bf16.mxu0 %v561
      %698 = vmatpush1.bf16.msra.mxu0 %v560
      %699 = vmatprep.subr.bf16.mxu0 %v563
      %700 = vmatpush1.bf16.msra.mxu0 %v562
      %701 = vmatprep.mubr.bf16.mxu0 %v231
      %702 = vmatmul.mubr.bf16.gmra.mrb[0].mxu0 %v230
      %v703 = vpop.f32.mrb[0].mxu0
      %v704 = vadd.f32 %v663, %v703
      %v705 = vpop.f32.mrb[0].mxu0
      %v706 = vadd.f32 %v665, %v705
      %v707 = vpop.f32.mrb[0].mxu0
      %v708 = vpop.f32.mrb[0].mxu0
      %709 = vdwg.mxu0
      %v710 = vmax.f32 %v704, 0.0
      %v711 = vmax.f32 %v706, 0.0
      %v712 = vpack.c.bf16 %v710, %v710
      %v713 = vpack.c.bf16 %v711, %v711
      %v714 = vld [vmem:[%s3] sm:$0xf]
      %v715 = vld [vmem:[%s3 + $0x4] sm:$0xf]
      %v716 = vld [vmem:[%s3 + $0x8] sm:$0xf]
      %v717 = vld [vmem:[%s3 + $0xc] sm:$0xf]
      %v718 = vld [vmem:[%s3 + $0x10] sm:$0xf]
      %v719 = vld [vmem:[%s3 + $0x14] sm:$0xf]
      %v720 = vld [vmem:[%s3 + $0x18] sm:$0xf]
      %v721 = vld [vmem:[%s3 + $0x1c] sm:$0xf]
      %v722 = vld [vmem:[%s3 + $0x20] sm:$0xf]
      %v723 = vld [vmem:[%s3 + $0x24] sm:$0xf]
      %v724 = vld [vmem:[%s3 + $0x28] sm:$0xf]
      %v725 = vld [vmem:[%s3 + $0x2c] sm:$0xf]
      %v726 = vld [vmem:[%s3 + $0x30] sm:$0xf]
      %v727 = vld [vmem:[%s3 + $0x34] sm:$0xf]
      %v728 = vld [vmem:[%s3 + $0x38] sm:$0xf]
      %v729 = vld [vmem:[%s3 + $0x3c] sm:$0xf]
      %v730 = vld [vmem:[%s3 + $0x40] sm:$0xf]
      %v731 = vld [vmem:[%s3 + $0x44] sm:$0xf]
      %v732 = vld [vmem:[%s3 + $0x48] sm:$0xf]
      %v733 = vld [vmem:[%s3 + $0x4c] sm:$0xf]
      %v734 = vld [vmem:[%s3 + $0x50] sm:$0xf]
      %v735 = vld [vmem:[%s3 + $0x54] sm:$0xf]
      %v736 = vld [vmem:[%s3 + $0x58] sm:$0xf]
      %v737 = vld [vmem:[%s3 + $0x5c] sm:$0xf]
      %v738 = vld [vmem:[%s3 + $0x60] sm:$0xf]
      %v739 = vld [vmem:[%s3 + $0x64] sm:$0xf]
      %v740 = vld [vmem:[%s3 + $0x68] sm:$0xf]
      %v741 = vld [vmem:[%s3 + $0x6c] sm:$0xf]
      %v742 = vld [vmem:[%s3 + $0x70] sm:$0xf]
      %v743 = vld [vmem:[%s3 + $0x74] sm:$0xf]
      %v744 = vld [vmem:[%s3 + $0x78] sm:$0xf]
      %v745 = vld [vmem:[%s3 + $0x7c] sm:$0xf]
      %v746 = vld [vmem:[%s4] sm:$0x1]
      %v748 = vlaneseq
      %v749 = vshrl.u32 %v748, 7
      %v750 = vsub.s32 0, %v749
      %v751 = vrot.slane %v746, %v750
      %v785 = vunpack.c.l.b16 %v714
      %v786 = vunpack.c.l.b16 %v715
      %v787 = vunpack.c.l.b16 %v716
      %v788 = vunpack.c.l.b16 %v717
      %v789 = vunpack.c.l.b16 %v718
      %v790 = vunpack.c.l.b16 %v719
      %v791 = vunpack.c.l.b16 %v720
      %v792 = vunpack.c.l.b16 %v721
      %v793 = vunpack.c.l.b16 %v722
      %v794 = vunpack.c.l.b16 %v723
      %v795 = vunpack.c.l.b16 %v724
      %v796 = vunpack.c.l.b16 %v725
      %v797 = vunpack.c.l.b16 %v726
      %v798 = vunpack.c.l.b16 %v727
      %v799 = vunpack.c.l.b16 %v728
      %v800 = vunpack.c.l.b16 %v729
      %v801 = vunpack.c.l.b16 %v730
      %v802 = vunpack.c.l.b16 %v731
      %v803 = vunpack.c.l.b16 %v732
      %v804 = vunpack.c.l.b16 %v733
      %v805 = vunpack.c.l.b16 %v734
      %v806 = vunpack.c.l.b16 %v735
      %v807 = vunpack.c.l.b16 %v736
      %v808 = vunpack.c.l.b16 %v737
      %v809 = vunpack.c.l.b16 %v738
      %v810 = vunpack.c.l.b16 %v739
      %v811 = vunpack.c.l.b16 %v740
      %v812 = vunpack.c.l.b16 %v741
      %v813 = vunpack.c.l.b16 %v742
      %v814 = vunpack.c.l.b16 %v743
      %v815 = vunpack.c.l.b16 %v744
      %v816 = vunpack.c.l.b16 %v745
      %v817 = vpack.c.b16 %v786, %v785
      %v818 = vpack.c.b16 %v788, %v787
      %v819 = vpack.c.b16 %v790, %v789
      %v820 = vpack.c.b16 %v792, %v791
      %v821 = vpack.c.b16 %v794, %v793
      %v822 = vpack.c.b16 %v796, %v795
      %v823 = vpack.c.b16 %v798, %v797
      %v824 = vpack.c.b16 %v800, %v799
      %v825 = vpack.c.b16 %v802, %v801
      %v826 = vpack.c.b16 %v804, %v803
      %v827 = vpack.c.b16 %v806, %v805
      %v828 = vpack.c.b16 %v808, %v807
      %v829 = vpack.c.b16 %v810, %v809
      %v830 = vpack.c.b16 %v812, %v811
      %v831 = vpack.c.b16 %v814, %v813
      %v832 = vpack.c.b16 %v816, %v815
      %849 = vmatprep.subr.bf16.mxu0 0
      %850 = vmatpush1.bf16.msra.mxu0 %v817
      %851 = vmatprep.subr.bf16.mxu0 0
      %852 = vmatpush1.bf16.msra.mxu0 %v818
      %853 = vmatprep.subr.bf16.mxu0 0
      %854 = vmatpush1.bf16.msra.mxu0 %v819
      %855 = vmatprep.subr.bf16.mxu0 0
      %856 = vmatpush1.bf16.msra.mxu0 %v820
      %857 = vmatprep.subr.bf16.mxu0 0
      %858 = vmatpush1.bf16.msra.mxu0 %v821
      %859 = vmatprep.subr.bf16.mxu0 0
      %860 = vmatpush1.bf16.msra.mxu0 %v822
      %861 = vmatprep.subr.bf16.mxu0 0
      %862 = vmatpush1.bf16.msra.mxu0 %v823
      %863 = vmatprep.subr.bf16.mxu0 0
      %864 = vmatpush1.bf16.msra.mxu0 %v824
      %865 = vmatprep.subr.bf16.mxu0 0
      %866 = vmatpush1.bf16.msra.mxu0 %v825
      %867 = vmatprep.subr.bf16.mxu0 0
      %868 = vmatpush1.bf16.msra.mxu0 %v826
      %869 = vmatprep.subr.bf16.mxu0 0
      %870 = vmatpush1.bf16.msra.mxu0 %v827
      %871 = vmatprep.subr.bf16.mxu0 0
      %872 = vmatpush1.bf16.msra.mxu0 %v828
      %873 = vmatprep.subr.bf16.mxu0 0
      %874 = vmatpush1.bf16.msra.mxu0 %v829
      %875 = vmatprep.subr.bf16.mxu0 0
      %876 = vmatpush1.bf16.msra.mxu0 %v830
      %877 = vmatprep.subr.bf16.mxu0 0
      %878 = vmatpush1.bf16.msra.mxu0 %v831
      %879 = vmatprep.subr.bf16.mxu0 0
      %880 = vmatpush1.bf16.msra.mxu0 %v832
      %881 = vmatprep.mubr.bf16.mxu0 %v713
      %882 = vmatmul.mubr.bf16.gmra.mrb[0].mxu0 %v712
      %v883 = vpop.f32.mrb[0].mxu0
      %v884 = vadd.f32 %v751, %v883
      %v885 = vpop.f32.mrb[0].mxu0
      %v886 = vpop.f32.mrb[0].mxu0
      %v887 = vpop.f32.mrb[0].mxu0
      %888 = vdwg.mxu0
      %889 = vst [vmem:[%s222] sm:$0xff] %v884
      %p890 = scmp.lt.s32.totalorder %s16, 1
      %s891 = scalar_select %p890, %s16, 1
      %s892 = smul.addr %s891, 8
      %s893 = scalar_lea.vmem %s5, %s892
      // Predicated region
      $region41: #{heter_gcl_forward.1} parent=39 // pred_check
        %p894 = pneg %p144
      $region42: #{heter_gcl_forward.1} parent=39 // pred_check_branch
        %896 = sbr.rel (%p894) target = $region44
      $region43: #{heter_gcl_forward.1} parent=39 // pred_region
        _
      $region44: #{heter_gcl_forward.1} parent=39 // pred_fallthru
        _
    $region40: #{heter_gcl_forward.1} parent=5 // pred_fallthru
      _
    %p897 = scmp.le.s32.totalorder 2, %s11
    // Predicated region
    $region45: #{heter_gcl_forward.1} parent=5 // pred_check
      %p898 = pneg %p897
    $region46: #{heter_gcl_forward.1} parent=5 // pred_check_branch
      %900 = sbr.rel (%p898) target = $region48
    $region47: #{heter_gcl_forward.1} parent=5 // pred_region
      %s901 = ssub.s32 %s11, 2
      // Predicated region
      $region49: #{heter_gcl_forward.1} parent=47 // pred_check
        %p902 = pneg %p150
      $region50: #{heter_gcl_forward.1} parent=47 // pred_check_branch
        %904 = sbr.rel (%p902) target = $region52
      $region51: #{heter_gcl_forward.1} parent=47 // pred_region
        %p905 = scmp.lt.s32.totalorder %s17, 1
        %s906 = scalar_select %p905, %s17, 1
        %s907 = smul.addr %s906, 8
        %s908 = scalar_lea.vmem %s5, %s907
      $region52: #{heter_gcl_forward.1} parent=47 // pred_fallthru
        _
    $region48: #{heter_gcl_forward.1} parent=5 // pred_fallthru
      _
  $region6: #{heter_gcl_forward.1} parent=0 // loop_footer
    %s15 = sadd.s32 1, %s11
  $region7: #{heter_gcl_forward.1} parent=0 // loop_footer_branch
    %10 = sbr.rel target = $region3
  $region8: #{heter_gcl_forward.1} parent=0 // loop_exit
    _

</llo_original>
